<compile_context>
chip_gen: v5e
topology: v5e:2x2
jax: 0.10.0
libtpu: 0.0.40
codegen_flags: <defaults>
</compile_context>

<pallas_src>
import jax
import jax.numpy as jnp
from jax.experimental import pallas as pl
from jax.experimental.pallas import tpu as pltpu

HIDDEN = 128


def _forecast_kernel(x_ref, a_ref,
                     w1r_ref, w1n_ref, b1_ref,
                     w2cat_ref, b2_ref,
                     wf1_ref, bf1_ref,
                     wf2_ref, bf2_ref,
                     out_ref, cat_ref):
    # x, A and all weights arrive as bf16; accumulation and elementwise in f32.
    x = x_ref[...]          # [Np, F]   bf16
    A = a_ref[...]          # [Np, Np]  bf16

    # --- GraphConv 1: F -> 128 ---
    agg0 = jnp.dot(A, x, preferred_element_type=jnp.float32)        # [Np, F] f32
    h = (jnp.dot(x, w1r_ref[...], preferred_element_type=jnp.float32)
         + jnp.dot(agg0.astype(jnp.bfloat16), w1n_ref[...],
                   preferred_element_type=jnp.float32)
         + b1_ref[...])
    h = jnp.maximum(h, 0.0)                                          # [Np, 128] f32

    # --- GraphConv 2: 128 -> 128, fused into a single K=256 matmul ---
    h_bf = h.astype(jnp.bfloat16)
    agg1 = jnp.dot(A, h_bf, preferred_element_type=jnp.float32)      # [Np, 128] f32
    # Lane-aligned pack: [h | A@h] -> [Np, 256] bf16 scratch (no shuffles).
    cat_ref[:, :HIDDEN] = h_bf
    cat_ref[:, HIDDEN:2 * HIDDEN] = agg1.astype(jnp.bfloat16)
    h = (jnp.dot(cat_ref[...], w2cat_ref[...],
                 preferred_element_type=jnp.float32)
         + b2_ref[...])
    h = jnp.maximum(h, 0.0)

    # --- fc1: 128 -> 128, relu ---
    h = (jnp.dot(h.astype(jnp.bfloat16), wf1_ref[...],
                 preferred_element_type=jnp.float32)
         + bf1_ref[...])
    h = jnp.maximum(h, 0.0)

    # --- fc2: 128 -> C (output lanes padded to a multiple of 128) ---
    out_ref[...] = (jnp.dot(h.astype(jnp.bfloat16), wf2_ref[...],
                            preferred_element_type=jnp.float32)
                    + bf2_ref[...])


def build_dense_adjacency(edge_index, n_nodes):
    """Dense A[dst, src] with edge multiplicities. Static for a fixed graph:
    build once and reuse across forward calls (do NOT rebuild per step)."""
    src, dst = edge_index[0], edge_index[1]
    return jnp.zeros((n_nodes, n_nodes), jnp.float32).at[dst, src].add(1.0)


def _round_up(v, m):
    return ((v + m - 1) // m) * m


def financial_forecasting_forward(x, A, params):
    """x: [N, F] f32, A: [N, N] f32 dense aggregation matrix, params: dict."""
    n, f = x.shape
    c = params["wf2"].shape[1]
    n_pad = _round_up(n, 128)        # sublane- and lane-dense node dimension
    c_pad = _round_up(c, 128)        # lane-dense output (avoids vst.msk)

    # Pad + cast MXU operands to bf16 (f32 accumulate inside the kernel).
    xb = jnp.zeros((n_pad, f), jnp.bfloat16).at[:n].set(x.astype(jnp.bfloat16))
    Ab = jnp.zeros((n_pad, n_pad), jnp.bfloat16).at[:n, :n].set(A.astype(jnp.bfloat16))

    w1r = params["w1_root"].astype(jnp.bfloat16)
    w1n = params["w1_nei"].astype(jnp.bfloat16)
    b1 = params["b1"]
    # Fuse GC2 weights: [w2_root ; w2_nei] -> [256, 128]
    w2cat = jnp.concatenate([params["w2_root"], params["w2_nei"]],
                            axis=0).astype(jnp.bfloat16)
    b2 = params["b2"]
    wf1 = params["wf1"].astype(jnp.bfloat16)
    bf1 = params["bf1"]
    wf2p = (jnp.zeros((HIDDEN, c_pad), jnp.float32)
            .at[:, :c].set(params["wf2"]).astype(jnp.bfloat16))
    bf2p = jnp.zeros((1, c_pad), jnp.float32).at[:, :c].set(params["bf2"])

    vmem = pl.BlockSpec(memory_space=pltpu.MemorySpace.VMEM)
    operands = (xb, Ab, w1r, w1n, b1, w2cat, b2, wf1, bf1, wf2p, bf2p)

    out = pl.pallas_call(
        _forecast_kernel,
        out_shape=jax.ShapeDtypeStruct((n_pad, c_pad), jnp.float32),
        in_specs=[vmem] * len(operands),
        out_specs=vmem,
        scratch_shapes=[pltpu.VMEM((n_pad, 2 * HIDDEN), jnp.bfloat16)],
        # Footprint is < 1 MiB; 8 MiB leaves plenty of headroom on every
        # generation (never request the full 64 MiB physical VMEM of v7x).
        compiler_params=pltpu.CompilerParams(vmem_limit_bytes=8 << 20),
    )(*operands)
    return out[:n, :c]


def init_params(key, num_features, num_classes, hidden=HIDDEN):
    ks = jax.random.split(key, 12)

    def unif(k, shape, fan_in):
        bound = 1.0 / jnp.sqrt(jnp.float32(fan_in))
        return jax.random.uniform(k, shape, jnp.float32, -bound, bound)

    return {
        # GraphConv1: lin_root (no bias) + lin_rel (bias) ; stored (in, out)
        "w1_root": unif(ks[0], (num_features, hidden), num_features),
        "w1_nei":  unif(ks[1], (num_features, hidden), num_features),
        "b1":      unif(ks[2], (1, hidden), num_features),
        # GraphConv2
        "w2_root": unif(ks[3], (hidden, hidden), hidden),
        "w2_nei":  unif(ks[4], (hidden, hidden), hidden),
        "b2":      unif(ks[5], (1, hidden), hidden),
        # fc1
        "wf1":     unif(ks[6], (hidden, hidden), hidden),
        "bf1":     unif(ks[7], (1, hidden), hidden),
        # fc2
        "wf2":     unif(ks[8], (hidden, num_classes), hidden),
        "bf2":     unif(ks[9], (1, num_classes), hidden),
    }


if __name__ == "__main__":
    key = jax.random.PRNGKey(0)
    k_x, k_p = jax.random.split(key)

    N, F, C = 100, 10, 4  # nodes, num_features, num_classes (data.x = randn(100, 10))
    x = jax.random.normal(k_x, (N, F), jnp.float32)

    # Deterministic edge set: a directed ring plus its reverse (2N edges).
    idx = jnp.arange(N, dtype=jnp.int32)
    src = jnp.concatenate([idx, (idx + 1) % N])
    dst = jnp.concatenate([(idx + 1) % N, idx])
    edge_index = jnp.stack([src, dst], axis=0)

    params = init_params(k_p, F, C)

    # Build the dense aggregation matrix ONCE (static graph) outside the jit.
    A = build_dense_adjacency(edge_index, N)

    fwd = jax.jit(financial_forecasting_forward)
    out = fwd(x, A, params)
    jax.block_until_ready(out)
    assert out.shape == (N, C)

    # Pure-JAX f32 reference. The kernel uses bf16 MXU inputs with f32
    # accumulation, so tolerances are loosened accordingly.
    h = jnp.maximum(x @ params["w1_root"] + (A @ x) @ params["w1_nei"] + params["b1"], 0.0)
    h = jnp.maximum(h @ params["w2_root"] + (A @ h) @ params["w2_nei"] + params["b2"], 0.0)
    h = jnp.maximum(h @ params["wf1"] + params["bf1"], 0.0)
    ref = h @ params["wf2"] + params["bf2"]
    assert jnp.allclose(out, ref, atol=5e-2, rtol=5e-2), float(jnp.max(jnp.abs(out - ref)))

    print("KERNEL_OK")
</pallas_src>

<mosaic_0001>
module attributes {stable_mosaic.version = 11 : i64} {
  func.func @_forecast_kernel(%arg0: memref<128x10xbf16, #tpu.memory_space<vmem>>, %arg1: memref<128x128xbf16, #tpu.memory_space<vmem>>, %arg2: memref<10x128xbf16, #tpu.memory_space<vmem>>, %arg3: memref<10x128xbf16, #tpu.memory_space<vmem>>, %arg4: memref<1x128xf32, #tpu.memory_space<vmem>>, %arg5: memref<256x128xbf16, #tpu.memory_space<vmem>>, %arg6: memref<1x128xf32, #tpu.memory_space<vmem>>, %arg7: memref<128x128xbf16, #tpu.memory_space<vmem>>, %arg8: memref<1x128xf32, #tpu.memory_space<vmem>>, %arg9: memref<128x128xbf16, #tpu.memory_space<vmem>>, %arg10: memref<1x128xf32, #tpu.memory_space<vmem>>, %arg11: memref<128x128xf32, #tpu.memory_space<vmem>>, %arg12: memref<128x256xbf16, #tpu.memory_space<vmem>>) attributes {dimension_semantics = [], scalar_prefetch = 0 : i64, scratch_operands = 1 : i64, tpu.core_type = #tpu.core_type<tc>} {
    %c0 = arith.constant 0 : index
    %c0_0 = arith.constant 0 : index
    %0 = vector.load %arg0[%c0, %c0_0] : memref<128x10xbf16, #tpu.memory_space<vmem>>, vector<128x10xbf16>
    %c0_1 = arith.constant 0 : index
    %c0_2 = arith.constant 0 : index
    %1 = vector.load %arg1[%c0_1, %c0_2] : memref<128x128xbf16, #tpu.memory_space<vmem>>, vector<128x128xbf16>
    %cst = arith.constant dense<0.000000e+00> : vector<128x10xf32>
    %2 = tpu.matmul %1, %0, %cst {dimension_numbers = #tpu.dot_dimension_numbers<[1], [0], [0], [1], [0, 0, 1, 1], [], []>} : vector<128x128xbf16>, vector<128x10xbf16>, vector<128x10xf32> -> vector<128x10xf32>
    %c0_3 = arith.constant 0 : index
    %c0_4 = arith.constant 0 : index
    %3 = vector.load %arg2[%c0_3, %c0_4] : memref<10x128xbf16, #tpu.memory_space<vmem>>, vector<10x128xbf16>
    %cst_5 = arith.constant dense<0.000000e+00> : vector<128x128xf32>
    %4 = tpu.matmul %0, %3, %cst_5 {dimension_numbers = #tpu.dot_dimension_numbers<[1], [0], [0], [1], [0, 0, 1, 1], [], []>} : vector<128x10xbf16>, vector<10x128xbf16>, vector<128x128xf32> -> vector<128x128xf32>
    %5 = arith.truncf %2 : vector<128x10xf32> to vector<128x10xbf16>
    %c0_6 = arith.constant 0 : index
    %c0_7 = arith.constant 0 : index
    %6 = vector.load %arg3[%c0_6, %c0_7] : memref<10x128xbf16, #tpu.memory_space<vmem>>, vector<10x128xbf16>
    %cst_8 = arith.constant dense<0.000000e+00> : vector<128x128xf32>
    %7 = tpu.matmul %5, %6, %cst_8 {dimension_numbers = #tpu.dot_dimension_numbers<[1], [0], [0], [1], [0, 0, 1, 1], [], []>} : vector<128x10xbf16>, vector<10x128xbf16>, vector<128x128xf32> -> vector<128x128xf32>
    %8 = arith.addf %4, %7 : vector<128x128xf32>
    %c0_9 = arith.constant 0 : index
    %c0_10 = arith.constant 0 : index
    %9 = vector.load %arg4[%c0_9, %c0_10] : memref<1x128xf32, #tpu.memory_space<vmem>>, vector<1x128xf32>
    %10 = vector.broadcast %9 : vector<1x128xf32> to vector<128x128xf32>
    %11 = arith.addf %8, %10 : vector<128x128xf32>
    %cst_11 = arith.constant 0.000000e+00 : f32
    %12 = vector.broadcast %cst_11 : f32 to vector<128x128xf32>
    %13 = arith.maximumf %11, %12 : vector<128x128xf32>
    %14 = arith.truncf %13 : vector<128x128xf32> to vector<128x128xbf16>
    %cst_12 = arith.constant dense<0.000000e+00> : vector<128x128xf32>
    %15 = tpu.matmul %1, %14, %cst_12 {dimension_numbers = #tpu.dot_dimension_numbers<[1], [0], [0], [1], [0, 0, 1, 1], [], []>} : vector<128x128xbf16>, vector<128x128xbf16>, vector<128x128xf32> -> vector<128x128xf32>
    %c0_13 = arith.constant 0 : index
    %c0_14 = arith.constant 0 : index
    %16 = vector.load %arg12[%c0_13, %c0_14] : memref<128x256xbf16, #tpu.memory_space<vmem>>, vector<128x128xbf16>
    tpu.vector_store %arg12[%c0_13, %c0_14], %14 {strides = array<i32>} : memref<128x256xbf16, #tpu.memory_space<vmem>>, vector<128x128xbf16>,
    %17 = arith.truncf %15 : vector<128x128xf32> to vector<128x128xbf16>
    %c0_15 = arith.constant 0 : index
    %c128 = arith.constant 128 : index
    %18 = vector.load %arg12[%c0_15, %c128] : memref<128x256xbf16, #tpu.memory_space<vmem>>, vector<128x128xbf16>
    tpu.vector_store %arg12[%c0_15, %c128], %17 {strides = array<i32>} : memref<128x256xbf16, #tpu.memory_space<vmem>>, vector<128x128xbf16>,
    %c0_16 = arith.constant 0 : index
    %c0_17 = arith.constant 0 : index
    %19 = vector.load %arg12[%c0_16, %c0_17] : memref<128x256xbf16, #tpu.memory_space<vmem>>, vector<128x256xbf16>
    %c0_18 = arith.constant 0 : index
    %c0_19 = arith.constant 0 : index
    %20 = vector.load %arg5[%c0_18, %c0_19] : memref<256x128xbf16, #tpu.memory_space<vmem>>, vector<256x128xbf16>
    %cst_20 = arith.constant dense<0.000000e+00> : vector<128x128xf32>
    %21 = tpu.matmul %19, %20, %cst_20 {dimension_numbers = #tpu.dot_dimension_numbers<[1], [0], [0], [1], [0, 0, 1, 1], [], []>} : vector<128x256xbf16>, vector<256x128xbf16>, vector<128x128xf32> -> vector<128x128xf32>
    %c0_21 = arith.constant 0 : index
    %c0_22 = arith.constant 0 : index
    %22 = vector.load %arg6[%c0_21, %c0_22] : memref<1x128xf32, #tpu.memory_space<vmem>>, vector<1x128xf32>
    %23 = vector.broadcast %22 : vector<1x128xf32> to vector<128x128xf32>
    %24 = arith.addf %21, %23 : vector<128x128xf32>
    %cst_23 = arith.constant 0.000000e+00 : f32
    %25 = vector.broadcast %cst_23 : f32 to vector<128x128xf32>
    %26 = arith.maximumf %24, %25 : vector<128x128xf32>
    %27 = arith.truncf %26 : vector<128x128xf32> to vector<128x128xbf16>
    %c0_24 = arith.constant 0 : index
    %c0_25 = arith.constant 0 : index
    %28 = vector.load %arg7[%c0_24, %c0_25] : memref<128x128xbf16, #tpu.memory_space<vmem>>, vector<128x128xbf16>
    %cst_26 = arith.constant dense<0.000000e+00> : vector<128x128xf32>
    %29 = tpu.matmul %27, %28, %cst_26 {dimension_numbers = #tpu.dot_dimension_numbers<[1], [0], [0], [1], [0, 0, 1, 1], [], []>} : vector<128x128xbf16>, vector<128x128xbf16>, vector<128x128xf32> -> vector<128x128xf32>
    %c0_27 = arith.constant 0 : index
    %c0_28 = arith.constant 0 : index
    %30 = vector.load %arg8[%c0_27, %c0_28] : memref<1x128xf32, #tpu.memory_space<vmem>>, vector<1x128xf32>
    %31 = vector.broadcast %30 : vector<1x128xf32> to vector<128x128xf32>
    %32 = arith.addf %29, %31 : vector<128x128xf32>
    %cst_29 = arith.constant 0.000000e+00 : f32
    %33 = vector.broadcast %cst_29 : f32 to vector<128x128xf32>
    %34 = arith.maximumf %32, %33 : vector<128x128xf32>
    %35 = arith.truncf %34 : vector<128x128xf32> to vector<128x128xbf16>
    %c0_30 = arith.constant 0 : index
    %c0_31 = arith.constant 0 : index
    %36 = vector.load %arg9[%c0_30, %c0_31] : memref<128x128xbf16, #tpu.memory_space<vmem>>, vector<128x128xbf16>
    %cst_32 = arith.constant dense<0.000000e+00> : vector<128x128xf32>
    %37 = tpu.matmul %35, %36, %cst_32 {dimension_numbers = #tpu.dot_dimension_numbers<[1], [0], [0], [1], [0, 0, 1, 1], [], []>} : vector<128x128xbf16>, vector<128x128xbf16>, vector<128x128xf32> -> vector<128x128xf32>
    %c0_33 = arith.constant 0 : index
    %c0_34 = arith.constant 0 : index
    %38 = vector.load %arg10[%c0_33, %c0_34] : memref<1x128xf32, #tpu.memory_space<vmem>>, vector<1x128xf32>
    %39 = vector.broadcast %38 : vector<1x128xf32> to vector<128x128xf32>
    %40 = arith.addf %37, %39 : vector<128x128xf32>
    %c0_35 = arith.constant 0 : index
    %c0_36 = arith.constant 0 : index
    %41 = vector.load %arg11[%c0_35, %c0_36] : memref<128x128xf32, #tpu.memory_space<vmem>>, vector<128x128xf32>
    tpu.vector_store %arg11[%c0_35, %c0_36], %40 {strides = array<i32>} : memref<128x128xf32, #tpu.memory_space<vmem>>, vector<128x128xf32>,
    return
  }
}

</mosaic_0001>

<llo_original>
// kernel: financial_forecasting_forward.1
$region0: #{financial_forecasting_forward.1}
  #allocation0 [shape = 'u32[]', space=smem, size = 0x4, offset = 0x4, fixed_abs, tag = 'smem constant byte address 0x4 - core index']
  #allocation1 [shape = 'u32[72,128]{1,0:T(1,128)}', space=vmem, size = 0x9000, scoped, tag = 'internal scratch']
  #allocation2 [shape = 'bf16[128,256]{1,0:T(8,128)(2,1)}', space=vmem, size = 0x10000, scoped, tag = 'scratch operand']
  %s0 = inlined_call_operand.vmem [shape: bf16[128,10], index: 0, kind: input, shape index: {}]
  %s1 = inlined_call_operand.vmem [shape: bf16[128,128], index: 1, kind: input, shape index: {}]
  %s2 = inlined_call_operand.vmem [shape: bf16[10,128], index: 2, kind: input, shape index: {}]
  %s3 = inlined_call_operand.vmem [shape: bf16[10,128], index: 3, kind: input, shape index: {}]
  %s4 = inlined_call_operand.vmem [shape: f32[1,128], index: 4, kind: input, shape index: {}]
  %s5 = inlined_call_operand.vmem [shape: bf16[256,128], index: 5, kind: input, shape index: {}]
  %s6 = inlined_call_operand.vmem [shape: f32[1,128], index: 6, kind: input, shape index: {}]
  %s7 = inlined_call_operand.vmem [shape: bf16[128,128], index: 7, kind: input, shape index: {}]
  %s8 = inlined_call_operand.vmem [shape: f32[1,128], index: 8, kind: input, shape index: {}]
  %s9 = inlined_call_operand.vmem [shape: bf16[128,128], index: 9, kind: input, shape index: {}]
  %s10 = inlined_call_operand.vmem [shape: f32[1,128], index: 10, kind: input, shape index: {}]
  %s11 = inlined_call_operand.vmem [shape: f32[128,128], index: 11, kind: output, shape index: {}]
  %s12 = sld [smem:[#allocation0]]
  $region54: #{financial_forecasting_forward.1} parent=0
    _
  %s14 = ssub.s32 1, %s12
  %s15 = scalar_select 0, %s14, %s12
  // Predicated region
  $region2: #{financial_forecasting_forward.1} parent=0 // pred_check
    _
  $region3: #{financial_forecasting_forward.1} parent=0 // pred_check_branch
    %17 = sbr.rel (0) target = $region5
  $region4: #{financial_forecasting_forward.1} parent=0 // pred_region
    _
  $region5: #{financial_forecasting_forward.1} parent=0 // pred_fallthru
    _
  // Predicated region
  $region6: #{financial_forecasting_forward.1} parent=0 // pred_check
    _
  $region7: #{financial_forecasting_forward.1} parent=0 // pred_check_branch
    %19 = sbr.rel (0) target = $region9
  $region8: #{financial_forecasting_forward.1} parent=0 // pred_region
    _
  $region9: #{financial_forecasting_forward.1} parent=0 // pred_fallthru
    _
  // Predicated region
  $region10: #{financial_forecasting_forward.1} parent=0 // pred_check
    _
  $region11: #{financial_forecasting_forward.1} parent=0 // pred_check_branch
    %21 = sbr.rel (0) target = $region13
  $region12: #{financial_forecasting_forward.1} parent=0 // pred_region
    _
  $region13: #{financial_forecasting_forward.1} parent=0 // pred_fallthru
    _
  // Predicated region
  $region14: #{financial_forecasting_forward.1} parent=0 // pred_check
    _
  $region15: #{financial_forecasting_forward.1} parent=0 // pred_check_branch
    %23 = sbr.rel (0) target = $region17
  $region16: #{financial_forecasting_forward.1} parent=0 // pred_region
    _
  $region17: #{financial_forecasting_forward.1} parent=0 // pred_fallthru
    _
  // Predicated region
  $region18: #{financial_forecasting_forward.1} parent=0 // pred_check
    _
  $region19: #{financial_forecasting_forward.1} parent=0 // pred_check_branch
    %25 = sbr.rel (0) target = $region21
  $region20: #{financial_forecasting_forward.1} parent=0 // pred_region
    _
  $region21: #{financial_forecasting_forward.1} parent=0 // pred_fallthru
    _
  // Predicated region
  $region22: #{financial_forecasting_forward.1} parent=0 // pred_check
    _
  $region23: #{financial_forecasting_forward.1} parent=0 // pred_check_branch
    %27 = sbr.rel (0) target = $region25
  $region24: #{financial_forecasting_forward.1} parent=0 // pred_region
    _
  $region25: #{financial_forecasting_forward.1} parent=0 // pred_fallthru
    _
  // Predicated region
  $region26: #{financial_forecasting_forward.1} parent=0 // pred_check
    _
  $region27: #{financial_forecasting_forward.1} parent=0 // pred_check_branch
    %29 = sbr.rel (0) target = $region29
  $region28: #{financial_forecasting_forward.1} parent=0 // pred_region
    _
  $region29: #{financial_forecasting_forward.1} parent=0 // pred_fallthru
    _
  // Predicated region
  $region30: #{financial_forecasting_forward.1} parent=0 // pred_check
    _
  $region31: #{financial_forecasting_forward.1} parent=0 // pred_check_branch
    %31 = sbr.rel (0) target = $region33
  $region32: #{financial_forecasting_forward.1} parent=0 // pred_region
    _
  $region33: #{financial_forecasting_forward.1} parent=0 // pred_fallthru
    _
  // Predicated region
  $region34: #{financial_forecasting_forward.1} parent=0 // pred_check
    _
  $region35: #{financial_forecasting_forward.1} parent=0 // pred_check_branch
    %33 = sbr.rel (0) target = $region37
  $region36: #{financial_forecasting_forward.1} parent=0 // pred_region
    _
  $region37: #{financial_forecasting_forward.1} parent=0 // pred_fallthru
    _
  // Predicated region
  $region38: #{financial_forecasting_forward.1} parent=0 // pred_check
    _
  $region39: #{financial_forecasting_forward.1} parent=0 // pred_check_branch
    %35 = sbr.rel (0) target = $region41
  $region40: #{financial_forecasting_forward.1} parent=0 // pred_region
    _
  $region41: #{financial_forecasting_forward.1} parent=0 // pred_fallthru
    _
  // Predicated region
  $region42: #{financial_forecasting_forward.1} parent=0 // pred_check
    _
  $region43: #{financial_forecasting_forward.1} parent=0 // pred_check_branch
    %37 = sbr.rel (0) target = $region45
  $region44: #{financial_forecasting_forward.1} parent=0 // pred_region
    _
  $region45: #{financial_forecasting_forward.1} parent=0 // pred_fallthru
    _
  %v39 = vld [vmem:[%s0] sm:$0xf]
  %v40 = vld [vmem:[%s0 + $0x4] sm:$0xf]
  %v41 = vld [vmem:[%s0 + $0x8] sm:$0xf]
  %v42 = vld [vmem:[%s0 + $0xc] sm:$0xf]
  %v43 = vld [vmem:[%s0 + $0x10] sm:$0xf]
  %v44 = vld [vmem:[%s0 + $0x14] sm:$0xf]
  %v45 = vld [vmem:[%s0 + $0x18] sm:$0xf]
  %v46 = vld [vmem:[%s0 + $0x1c] sm:$0xf]
  %v47 = vld [vmem:[%s0 + $0x20] sm:$0xf]
  %v48 = vld [vmem:[%s0 + $0x24] sm:$0xf]
  %v49 = vld [vmem:[%s0 + $0x28] sm:$0xf]
  %v50 = vld [vmem:[%s0 + $0x2c] sm:$0xf]
  %v51 = vld [vmem:[%s0 + $0x30] sm:$0xf]
  %v52 = vld [vmem:[%s0 + $0x34] sm:$0xf]
  %v53 = vld [vmem:[%s0 + $0x38] sm:$0xf]
  %v54 = vld [vmem:[%s0 + $0x3c] sm:$0xf]
  %v55 = vld [vmem:[%s1] sm:$0xf]
  %v56 = vld [vmem:[%s1 + $0x4] sm:$0xf]
  %v57 = vld [vmem:[%s1 + $0x8] sm:$0xf]
  %v58 = vld [vmem:[%s1 + $0xc] sm:$0xf]
  %v59 = vld [vmem:[%s1 + $0x10] sm:$0xf]
  %v60 = vld [vmem:[%s1 + $0x14] sm:$0xf]
  %v61 = vld [vmem:[%s1 + $0x18] sm:$0xf]
  %v62 = vld [vmem:[%s1 + $0x1c] sm:$0xf]
  %v63 = vld [vmem:[%s1 + $0x20] sm:$0xf]
  %v64 = vld [vmem:[%s1 + $0x24] sm:$0xf]
  %v65 = vld [vmem:[%s1 + $0x28] sm:$0xf]
  %v66 = vld [vmem:[%s1 + $0x2c] sm:$0xf]
  %v67 = vld [vmem:[%s1 + $0x30] sm:$0xf]
  %v68 = vld [vmem:[%s1 + $0x34] sm:$0xf]
  %v69 = vld [vmem:[%s1 + $0x38] sm:$0xf]
  %v70 = vld [vmem:[%s1 + $0x3c] sm:$0xf]
  %v87 = vunpack.c.l.b16 %v55
  %v88 = vunpack.c.l.b16 %v56
  %v89 = vunpack.c.l.b16 %v57
  %v90 = vunpack.c.l.b16 %v58
  %v91 = vunpack.c.l.b16 %v59
  %v92 = vunpack.c.l.b16 %v60
  %v93 = vunpack.c.l.b16 %v61
  %v94 = vunpack.c.l.b16 %v62
  %v95 = vunpack.c.l.b16 %v63
  %v96 = vunpack.c.l.b16 %v64
  %v97 = vunpack.c.l.b16 %v65
  %v98 = vunpack.c.l.b16 %v66
  %v99 = vunpack.c.l.b16 %v67
  %v100 = vunpack.c.l.b16 %v68
  %v101 = vunpack.c.l.b16 %v69
  %v102 = vunpack.c.l.b16 %v70
  %v103 = vpack.c.b16 %v88, %v87
  %v104 = vpack.c.b16 %v90, %v89
  %v105 = vpack.c.b16 %v92, %v91
  %v106 = vpack.c.b16 %v94, %v93
  %v107 = vpack.c.b16 %v96, %v95
  %v108 = vpack.c.b16 %v98, %v97
  %v109 = vpack.c.b16 %v100, %v99
  %v110 = vpack.c.b16 %v102, %v101
  %v135 = vunpack.c.l.b16 %v39
  %v136 = vunpack.c.l.b16 %v40
  %v137 = vunpack.c.l.b16 %v41
  %v138 = vunpack.c.l.b16 %v42
  %v139 = vunpack.c.l.b16 %v43
  %v140 = vunpack.c.l.b16 %v44
  %v141 = vunpack.c.l.b16 %v45
  %v142 = vunpack.c.l.b16 %v46
  %v143 = vunpack.c.l.b16 %v47
  %v144 = vunpack.c.l.b16 %v48
  %v145 = vunpack.c.l.b16 %v49
  %v146 = vunpack.c.l.b16 %v50
  %v147 = vunpack.c.l.b16 %v51
  %v148 = vunpack.c.l.b16 %v52
  %v149 = vunpack.c.l.b16 %v53
  %v150 = vunpack.c.l.b16 %v54
  %v151 = vpack.c.b16 %v136, %v135
  %v152 = vpack.c.b16 %v138, %v137
  %v153 = vpack.c.b16 %v140, %v139
  %v154 = vpack.c.b16 %v142, %v141
  %v155 = vpack.c.b16 %v144, %v143
  %v156 = vpack.c.b16 %v146, %v145
  %v157 = vpack.c.b16 %v148, %v147
  %v158 = vpack.c.b16 %v150, %v149
  %167 = vmatpush.bf16.msra.mxu0 %v158
  %168 = vmatpush.bf16.msra.mxu0 %v157
  %169 = vmatpush.bf16.msra.mxu0 %v156
  %170 = vmatpush.bf16.msra.mxu0 %v155
  %171 = vmatpush.bf16.msra.mxu0 %v154
  %172 = vmatpush.bf16.msra.mxu0 %v153
  %173 = vmatpush.bf16.msra.mxu0 %v152
  %174 = vmatpush.bf16.msra.mxu0 %v151
  %175 = vmatmul.bf16.gmra.mxu0 %v103
  %v176 = vpop.f32.mrf.mxu0
  %v177 = vadd.f32 0.0, %v176
  %v178 = vpop.f32.mrf.mxu0
  %v179 = vadd.f32 0.0, %v178
  %180 = vmatmul.bf16.gmra.mxu0 %v104
  %v181 = vpop.f32.mrf.mxu0
  %v182 = vadd.f32 0.0, %v181
  %v183 = vpop.f32.mrf.mxu0
  %v184 = vadd.f32 0.0, %v183
  %185 = vmatmul.bf16.gmra.mxu0 %v105
  %v186 = vpop.f32.mrf.mxu0
  %v187 = vadd.f32 0.0, %v186
  %v188 = vpop.f32.mrf.mxu0
  %v189 = vadd.f32 0.0, %v188
  %190 = vmatmul.bf16.gmra.mxu0 %v106
  %v191 = vpop.f32.mrf.mxu0
  %v192 = vadd.f32 0.0, %v191
  %v193 = vpop.f32.mrf.mxu0
  %v194 = vadd.f32 0.0, %v193
  %195 = vmatmul.bf16.gmra.mxu0 %v107
  %v196 = vpop.f32.mrf.mxu0
  %v197 = vadd.f32 0.0, %v196
  %v198 = vpop.f32.mrf.mxu0
  %v199 = vadd.f32 0.0, %v198
  %200 = vmatmul.bf16.gmra.mxu0 %v108
  %v201 = vpop.f32.mrf.mxu0
  %v202 = vadd.f32 0.0, %v201
  %v203 = vpop.f32.mrf.mxu0
  %v204 = vadd.f32 0.0, %v203
  %205 = vmatmul.bf16.gmra.mxu0 %v109
  %v206 = vpop.f32.mrf.mxu0
  %v207 = vadd.f32 0.0, %v206
  %v208 = vpop.f32.mrf.mxu0
  %v209 = vadd.f32 0.0, %v208
  %210 = vmatmul.bf16.gmra.mxu0 %v110
  %v211 = vpop.f32.mrf.mxu0
  %v212 = vadd.f32 0.0, %v211
  %v213 = vpop.f32.mrf.mxu0
  %v214 = vadd.f32 0.0, %v213
  %215 = vdwg.mxu0
  %v216 = vld [vmem:[%s2] sm:$0xf]
  %v217 = vld [vmem:[%s2 + $0x4] sm:$0x1]
  %v218 = vpack.c.bf16 %v179, %v177
  %v219 = vpack.c.bf16 %v184, %v182
  %v220 = vpack.c.bf16 %v189, %v187
  %v221 = vpack.c.bf16 %v194, %v192
  %v222 = vpack.c.bf16 %v199, %v197
  %v223 = vpack.c.bf16 %v204, %v202
  %v224 = vpack.c.bf16 %v209, %v207
  %v225 = vpack.c.bf16 %v214, %v212
  %v226 = vld [vmem:[%s3] sm:$0xf]
  %v227 = vld [vmem:[%s3 + $0x4] sm:$0x1]
  %v230 = vunpack.c.l.b16 %v226
  %v231 = vunpack.c.l.b16 %v227
  %v232 = vpack.c.b16 %v231, %v230
  %vm233 = vcmask 80896
  %v235 = vsel %vm233, %v218, 0
  %v238 = vsel %vm233, %v219, 0
  %v241 = vsel %vm233, %v220, 0
  %v244 = vsel %vm233, %v221, 0
  %v247 = vsel %vm233, %v222, 0
  %v250 = vsel %vm233, %v223, 0
  %v253 = vsel %vm233, %v224, 0
  %v256 = vsel %vm233, %v225, 0
  %vm258 = vcmask 1044480
  %v260 = vsel %vm258, %v232, 0
  %262 = vmatpush.bf16.msra.mxu0 0
  %263 = vmatpush.bf16.msra.mxu0 0
  %264 = vmatpush.bf16.msra.mxu0 0
  %265 = vmatpush.bf16.msra.mxu0 0
  %266 = vmatpush.bf16.msra.mxu0 0
  %267 = vmatpush.bf16.msra.mxu0 0
  %268 = vmatpush.bf16.msra.mxu0 0
  %269 = vmatpush.bf16.msra.mxu0 %v260
  %270 = vmatmul.bf16.gmra.mxu0 %v235
  %v271 = vpop.f32.mrf.mxu0
  %v272 = vadd.f32 0.0, %v271
  %v273 = vpop.f32.mrf.mxu0
  %v274 = vadd.f32 0.0, %v273
  %275 = vmatmul.bf16.gmra.mxu0 %v238
  %v276 = vpop.f32.mrf.mxu0
  %v277 = vadd.f32 0.0, %v276
  %v278 = vpop.f32.mrf.mxu0
  %v279 = vadd.f32 0.0, %v278
  %280 = vmatmul.bf16.gmra.mxu0 %v241
  %v281 = vpop.f32.mrf.mxu0
  %v282 = vadd.f32 0.0, %v281
  %v283 = vpop.f32.mrf.mxu0
  %v284 = vadd.f32 0.0, %v283
  %285 = vmatmul.bf16.gmra.mxu0 %v244
  %v286 = vpop.f32.mrf.mxu0
  %v287 = vadd.f32 0.0, %v286
  %v288 = vpop.f32.mrf.mxu0
  %v289 = vadd.f32 0.0, %v288
  %290 = vmatmul.bf16.gmra.mxu0 %v247
  %v291 = vpop.f32.mrf.mxu0
  %v292 = vadd.f32 0.0, %v291
  %v293 = vpop.f32.mrf.mxu0
  %v294 = vadd.f32 0.0, %v293
  %295 = vmatmul.bf16.gmra.mxu0 %v250
  %v296 = vpop.f32.mrf.mxu0
  %v297 = vadd.f32 0.0, %v296
  %v298 = vpop.f32.mrf.mxu0
  %v299 = vadd.f32 0.0, %v298
  %300 = vmatmul.bf16.gmra.mxu0 %v253
  %v301 = vpop.f32.mrf.mxu0
  %v302 = vadd.f32 0.0, %v301
  %v303 = vpop.f32.mrf.mxu0
  %v304 = vadd.f32 0.0, %v303
  %305 = vmatmul.bf16.gmra.mxu0 %v256
  %v306 = vpop.f32.mrf.mxu0
  %v307 = vadd.f32 0.0, %v306
  %v308 = vpop.f32.mrf.mxu0
  %v309 = vadd.f32 0.0, %v308
  %310 = vdwg.mxu0
  %v313 = vunpack.c.l.b16 %v216
  %v314 = vunpack.c.l.b16 %v217
  %v315 = vpack.c.b16 %v314, %v313
  %v317 = vsel %vm233, %v151, 0
  %v320 = vsel %vm233, %v152, 0
  %v323 = vsel %vm233, %v153, 0
  %v326 = vsel %vm233, %v154, 0
  %v329 = vsel %vm233, %v155, 0
  %v332 = vsel %vm233, %v156, 0
  %v335 = vsel %vm233, %v157, 0
  %v338 = vsel %vm233, %v158, 0
  %v341 = vsel %vm258, %v315, 0
  %343 = vmatpush.bf16.msra.mxu0 0
  %344 = vmatpush.bf16.msra.mxu0 0
  %345 = vmatpush.bf16.msra.mxu0 0
  %346 = vmatpush.bf16.msra.mxu0 0
  %347 = vmatpush.bf16.msra.mxu0 0
  %348 = vmatpush.bf16.msra.mxu0 0
  %349 = vmatpush.bf16.msra.mxu0 0
  %350 = vmatpush.bf16.msra.mxu0 %v341
  %351 = vmatmul.bf16.gmra.mxu0 %v317
  %v352 = vpop.f32.mrf.mxu0
  %v353 = vadd.f32 %v272, %v352
  %v354 = vpop.f32.mrf.mxu0
  %v355 = vadd.f32 %v274, %v354
  %356 = vmatmul.bf16.gmra.mxu0 %v320
  %v357 = vpop.f32.mrf.mxu0
  %v358 = vadd.f32 %v277, %v357
  %v359 = vpop.f32.mrf.mxu0
  %v360 = vadd.f32 %v279, %v359
  %361 = vmatmul.bf16.gmra.mxu0 %v323
  %v362 = vpop.f32.mrf.mxu0
  %v363 = vadd.f32 %v282, %v362
  %v364 = vpop.f32.mrf.mxu0
  %v365 = vadd.f32 %v284, %v364
  %366 = vmatmul.bf16.gmra.mxu0 %v326
  %v367 = vpop.f32.mrf.mxu0
  %v368 = vadd.f32 %v287, %v367
  %v369 = vpop.f32.mrf.mxu0
  %v370 = vadd.f32 %v289, %v369
  %371 = vmatmul.bf16.gmra.mxu0 %v329
  %v372 = vpop.f32.mrf.mxu0
  %v373 = vadd.f32 %v292, %v372
  %v374 = vpop.f32.mrf.mxu0
  %v375 = vadd.f32 %v294, %v374
  %376 = vmatmul.bf16.gmra.mxu0 %v332
  %v377 = vpop.f32.mrf.mxu0
  %v378 = vadd.f32 %v297, %v377
  %v379 = vpop.f32.mrf.mxu0
  %v380 = vadd.f32 %v299, %v379
  %381 = vmatmul.bf16.gmra.mxu0 %v335
  %v382 = vpop.f32.mrf.mxu0
  %v383 = vadd.f32 %v302, %v382
  %v384 = vpop.f32.mrf.mxu0
  %v385 = vadd.f32 %v304, %v384
  %386 = vmatmul.bf16.gmra.mxu0 %v338
  %v387 = vpop.f32.mrf.mxu0
  %v388 = vadd.f32 %v307, %v387
  %v389 = vpop.f32.mrf.mxu0
  %v390 = vadd.f32 %v309, %v389
  %391 = vdwg.mxu0
  %v392 = vld [vmem:[%s4] sm:$0x1]
  %v394 = vperm.slane %v392, 0
  %v396 = vadd.f32 %v353, %v394
  %v397 = vadd.f32 %v355, %v394
  %v398 = vadd.f32 %v358, %v394
  %v399 = vadd.f32 %v360, %v394
  %v400 = vadd.f32 %v363, %v394
  %v401 = vadd.f32 %v365, %v394
  %v402 = vadd.f32 %v368, %v394
  %v403 = vadd.f32 %v370, %v394
  %v404 = vadd.f32 %v373, %v394
  %v405 = vadd.f32 %v375, %v394
  %v406 = vadd.f32 %v378, %v394
  %v407 = vadd.f32 %v380, %v394
  %v408 = vadd.f32 %v383, %v394
  %v409 = vadd.f32 %v385, %v394
  %v410 = vadd.f32 %v388, %v394
  %v411 = vadd.f32 %v390, %v394
  %v412 = vmax.f32 %v396, 0.0
  %v413 = vmax.f32 %v397, 0.0
  %v414 = vmax.f32 %v398, 0.0
  %v415 = vmax.f32 %v399, 0.0
  %v416 = vmax.f32 %v400, 0.0
  %v417 = vmax.f32 %v401, 0.0
  %v418 = vmax.f32 %v402, 0.0
  %v419 = vmax.f32 %v403, 0.0
  %v420 = vmax.f32 %v404, 0.0
  %v421 = vmax.f32 %v405, 0.0
  %v422 = vmax.f32 %v406, 0.0
  %v423 = vmax.f32 %v407, 0.0
  %v424 = vmax.f32 %v408, 0.0
  %v425 = vmax.f32 %v409, 0.0
  %v426 = vmax.f32 %v410, 0.0
  %v427 = vmax.f32 %v411, 0.0
  %v428 = vpack.c.bf16 %v412, %v412
  %v429 = vpack.c.bf16 %v413, %v413
  %v430 = vpack.c.bf16 %v414, %v414
  %v431 = vpack.c.bf16 %v415, %v415
  %v432 = vpack.c.bf16 %v416, %v416
  %v433 = vpack.c.bf16 %v417, %v417
  %v434 = vpack.c.bf16 %v418, %v418
  %v435 = vpack.c.bf16 %v419, %v419
  %v436 = vpack.c.bf16 %v420, %v420
  %v437 = vpack.c.bf16 %v421, %v421
  %v438 = vpack.c.bf16 %v422, %v422
  %v439 = vpack.c.bf16 %v423, %v423
  %v440 = vpack.c.bf16 %v424, %v424
  %v441 = vpack.c.bf16 %v425, %v425
  %v442 = vpack.c.bf16 %v426, %v426
  %v443 = vpack.c.bf16 %v427, %v427
  %v460 = vunpack.c.l.b16 %v428
  %v461 = vunpack.c.l.b16 %v429
  %v462 = vunpack.c.l.b16 %v430
  %v463 = vunpack.c.l.b16 %v431
  %v464 = vunpack.c.l.b16 %v432
  %v465 = vunpack.c.l.b16 %v433
  %v466 = vunpack.c.l.b16 %v434
  %v467 = vunpack.c.l.b16 %v435
  %v468 = vunpack.c.l.b16 %v436
  %v469 = vunpack.c.l.b16 %v437
  %v470 = vunpack.c.l.b16 %v438
  %v471 = vunpack.c.l.b16 %v439
  %v472 = vunpack.c.l.b16 %v440
  %v473 = vunpack.c.l.b16 %v441
  %v474 = vunpack.c.l.b16 %v442
  %v475 = vunpack.c.l.b16 %v443
  %v476 = vpack.c.b16 %v461, %v460
  %v477 = vpack.c.b16 %v463, %v462
  %v478 = vpack.c.b16 %v465, %v464
  %v479 = vpack.c.b16 %v467, %v466
  %v480 = vpack.c.b16 %v469, %v468
  %v481 = vpack.c.b16 %v471, %v470
  %v482 = vpack.c.b16 %v473, %v472
  %v483 = vpack.c.b16 %v475, %v474
  %492 = vmatpush.bf16.msra.mxu0 %v483
  %493 = vmatpush.bf16.msra.mxu0 %v482
  %494 = vmatpush.bf16.msra.mxu0 %v481
  %495 = vmatpush.bf16.msra.mxu0 %v480
  %496 = vmatpush.bf16.msra.mxu0 %v479
  %497 = vmatpush.bf16.msra.mxu0 %v478
  %498 = vmatpush.bf16.msra.mxu0 %v477
  %499 = vmatpush.bf16.msra.mxu0 %v476
  %500 = vmatmul.bf16.gmra.mxu0 %v103
  %v501 = vpop.f32.mrf.mxu0
  %v502 = vadd.f32 0.0, %v501
  %v503 = vpop.f32.mrf.mxu0
  %v504 = vadd.f32 0.0, %v503
  %505 = vmatmul.bf16.gmra.mxu0 %v104
  %v506 = vpop.f32.mrf.mxu0
  %v507 = vadd.f32 0.0, %v506
  %v508 = vpop.f32.mrf.mxu0
  %v509 = vadd.f32 0.0, %v508
  %510 = vmatmul.bf16.gmra.mxu0 %v105
  %v511 = vpop.f32.mrf.mxu0
  %v512 = vadd.f32 0.0, %v511
  %v513 = vpop.f32.mrf.mxu0
  %v514 = vadd.f32 0.0, %v513
  %515 = vmatmul.bf16.gmra.mxu0 %v106
  %v516 = vpop.f32.mrf.mxu0
  %v517 = vadd.f32 0.0, %v516
  %v518 = vpop.f32.mrf.mxu0
  %v519 = vadd.f32 0.0, %v518
  %520 = vmatmul.bf16.gmra.mxu0 %v107
  %v521 = vpop.f32.mrf.mxu0
  %v522 = vadd.f32 0.0, %v521
  %v523 = vpop.f32.mrf.mxu0
  %v524 = vadd.f32 0.0, %v523
  %525 = vmatmul.bf16.gmra.mxu0 %v108
  %v526 = vpop.f32.mrf.mxu0
  %v527 = vadd.f32 0.0, %v526
  %v528 = vpop.f32.mrf.mxu0
  %v529 = vadd.f32 0.0, %v528
  %530 = vmatmul.bf16.gmra.mxu0 %v109
  %v531 = vpop.f32.mrf.mxu0
  %v532 = vadd.f32 0.0, %v531
  %v533 = vpop.f32.mrf.mxu0
  %v534 = vadd.f32 0.0, %v533
  %535 = vmatmul.bf16.gmra.mxu0 %v110
  %v536 = vpop.f32.mrf.mxu0
  %v537 = vadd.f32 0.0, %v536
  %v538 = vpop.f32.mrf.mxu0
  %v539 = vadd.f32 0.0, %v538
  %540 = vdwg.mxu0
  %541 = vst [vmem:[#allocation2] sm:$0xf] %v428
  %542 = vst [vmem:[#allocation2 + $0x8] sm:$0xf] %v429
  %543 = vst [vmem:[#allocation2 + $0x10] sm:$0xf] %v430
  %544 = vst [vmem:[#allocation2 + $0x18] sm:$0xf] %v431
  %545 = vst [vmem:[#allocation2 + $0x20] sm:$0xf] %v432
  %546 = vst [vmem:[#allocation2 + $0x28] sm:$0xf] %v433
  %547 = vst [vmem:[#allocation2 + $0x30] sm:$0xf] %v434
  %548 = vst [vmem:[#allocation2 + $0x38] sm:$0xf] %v435
  %549 = vst [vmem:[#allocation2 + $0x40] sm:$0xf] %v436
  %550 = vst [vmem:[#allocation2 + $0x48] sm:$0xf] %v437
  %551 = vst [vmem:[#allocation2 + $0x50] sm:$0xf] %v438
  %552 = vst [vmem:[#allocation2 + $0x58] sm:$0xf] %v439
  %553 = vst [vmem:[#allocation2 + $0x60] sm:$0xf] %v440
  %554 = vst [vmem:[#allocation2 + $0x68] sm:$0xf] %v441
  %555 = vst [vmem:[#allocation2 + $0x70] sm:$0xf] %v442
  %556 = vst [vmem:[#allocation2 + $0x78] sm:$0xf] %v443
  %v557 = vpack.c.bf16 %v502, %v502
  %v558 = vpack.c.bf16 %v504, %v504
  %v559 = vpack.c.bf16 %v507, %v507
  %v560 = vpack.c.bf16 %v509, %v509
  %v561 = vpack.c.bf16 %v512, %v512
  %v562 = vpack.c.bf16 %v514, %v514
  %v563 = vpack.c.bf16 %v517, %v517
  %v564 = vpack.c.bf16 %v519, %v519
  %v565 = vpack.c.bf16 %v522, %v522
  %v566 = vpack.c.bf16 %v524, %v524
  %v567 = vpack.c.bf16 %v527, %v527
  %v568 = vpack.c.bf16 %v529, %v529
  %v569 = vpack.c.bf16 %v532, %v532
  %v570 = vpack.c.bf16 %v534, %v534
  %v571 = vpack.c.bf16 %v537, %v537
  %v572 = vpack.c.bf16 %v539, %v539
  %573 = vst [vmem:[#allocation2 + $0x4] sm:$0xf] %v557
  %574 = vst [vmem:[#allocation2 + $0xc] sm:$0xf] %v558
  %575 = vst [vmem:[#allocation2 + $0x14] sm:$0xf] %v559
  %576 = vst [vmem:[#allocation2 + $0x1c] sm:$0xf] %v560
  %577 = vst [vmem:[#allocation2 + $0x24] sm:$0xf] %v561
  %578 = vst [vmem:[#allocation2 + $0x2c] sm:$0xf] %v562
  %579 = vst [vmem:[#allocation2 + $0x34] sm:$0xf] %v563
  %580 = vst [vmem:[#allocation2 + $0x3c] sm:$0xf] %v564
  %581 = vst [vmem:[#allocation2 + $0x44] sm:$0xf] %v565
  %582 = vst [vmem:[#allocation2 + $0x4c] sm:$0xf] %v566
  %583 = vst [vmem:[#allocation2 + $0x54] sm:$0xf] %v567
  %584 = vst [vmem:[#allocation2 + $0x5c] sm:$0xf] %v568
  %585 = vst [vmem:[#allocation2 + $0x64] sm:$0xf] %v569
  %586 = vst [vmem:[#allocation2 + $0x6c] sm:$0xf] %v570
  %587 = vst [vmem:[#allocation2 + $0x74] sm:$0xf] %v571
  %588 = vst [vmem:[#allocation2 + $0x7c] sm:$0xf] %v572
  %v589 = vld [vmem:[#allocation2] sm:$0xff]
  %v590 = vld [vmem:[#allocation2 + $0x8] sm:$0xff]
  %v591 = vld [vmem:[#allocation2 + $0x10] sm:$0xff]
  %v592 = vld [vmem:[#allocation2 + $0x18] sm:$0xff]
  %v593 = vld [vmem:[#allocation2 + $0x20] sm:$0xff]
  %v594 = vld [vmem:[#allocation2 + $0x28] sm:$0xff]
  %v595 = vld [vmem:[#allocation2 + $0x30] sm:$0xff]
  %v596 = vld [vmem:[#allocation2 + $0x38] sm:$0xff]
  %v597 = vld [vmem:[#allocation2 + $0x40] sm:$0xff]
  %v598 = vld [vmem:[#allocation2 + $0x48] sm:$0xff]
  %v599 = vld [vmem:[#allocation2 + $0x50] sm:$0xff]
  %v600 = vld [vmem:[#allocation2 + $0x58] sm:$0xff]
  %v601 = vld [vmem:[#allocation2 + $0x60] sm:$0xff]
  %v602 = vld [vmem:[#allocation2 + $0x68] sm:$0xff]
  %v603 = vld [vmem:[#allocation2 + $0x70] sm:$0xff]
  %v604 = vld [vmem:[#allocation2 + $0x78] sm:$0xff]
  %v605 = vld [vmem:[%s5] sm:$0xf]
  %v606 = vld [vmem:[%s5 + $0x4] sm:$0xf]
  %v607 = vld [vmem:[%s5 + $0x8] sm:$0xf]
  %v608 = vld [vmem:[%s5 + $0xc] sm:$0xf]
  %v609 = vld [vmem:[%s5 + $0x10] sm:$0xf]
  %v610 = vld [vmem:[%s5 + $0x14] sm:$0xf]
  %v611 = vld [vmem:[%s5 + $0x18] sm:$0xf]
  %v612 = vld [vmem:[%s5 + $0x1c] sm:$0xf]
  %v613 = vld [vmem:[%s5 + $0x20] sm:$0xf]
  %v614 = vld [vmem:[%s5 + $0x24] sm:$0xf]
  %v615 = vld [vmem:[%s5 + $0x28] sm:$0xf]
  %v616 = vld [vmem:[%s5 + $0x2c] sm:$0xf]
  %v617 = vld [vmem:[%s5 + $0x30] sm:$0xf]
  %v618 = vld [vmem:[%s5 + $0x34] sm:$0xf]
  %v619 = vld [vmem:[%s5 + $0x38] sm:$0xf]
  %v620 = vld [vmem:[%s5 + $0x3c] sm:$0xf]
  %v621 = vld [vmem:[%s5 + $0x40] sm:$0xf]
  %v622 = vld [vmem:[%s5 + $0x44] sm:$0xf]
  %v623 = vld [vmem:[%s5 + $0x48] sm:$0xf]
  %v624 = vld [vmem:[%s5 + $0x4c] sm:$0xf]
  %v625 = vld [vmem:[%s5 + $0x50] sm:$0xf]
  %v626 = vld [vmem:[%s5 + $0x54] sm:$0xf]
  %v627 = vld [vmem:[%s5 + $0x58] sm:$0xf]
  %v628 = vld [vmem:[%s5 + $0x5c] sm:$0xf]
  %v629 = vld [vmem:[%s5 + $0x60] sm:$0xf]
  %v630 = vld [vmem:[%s5 + $0x64] sm:$0xf]
  %v631 = vld [vmem:[%s5 + $0x68] sm:$0xf]
  %v632 = vld [vmem:[%s5 + $0x6c] sm:$0xf]
  %v633 = vld [vmem:[%s5 + $0x70] sm:$0xf]
  %v634 = vld [vmem:[%s5 + $0x74] sm:$0xf]
  %v635 = vld [vmem:[%s5 + $0x78] sm:$0xf]
  %v636 = vld [vmem:[%s5 + $0x7c] sm:$0xf]
  %v637 = vld [vmem:[%s6] sm:$0x1]
  %v639 = vperm.slane %v637, 0
  %v657 = vunpack.c.l.b16 %v589
  %v658 = vunpack.c.h.b16 %v589
  %v659 = vunpack.c.l.b16 %v590
  %v660 = vunpack.c.h.b16 %v590
  %v661 = vunpack.c.l.b16 %v591
  %v662 = vunpack.c.h.b16 %v591
  %v663 = vunpack.c.l.b16 %v592
  %v664 = vunpack.c.h.b16 %v592
  %v665 = vunpack.c.l.b16 %v593
  %v666 = vunpack.c.h.b16 %v593
  %v667 = vunpack.c.l.b16 %v594
  %v668 = vunpack.c.h.b16 %v594
  %v669 = vunpack.c.l.b16 %v595
  %v670 = vunpack.c.h.b16 %v595
  %v671 = vunpack.c.l.b16 %v596
  %v672 = vunpack.c.h.b16 %v596
  %v673 = vunpack.c.l.b16 %v597
  %v674 = vunpack.c.h.b16 %v597
  %v675 = vunpack.c.l.b16 %v598
  %v676 = vunpack.c.h.b16 %v598
  %v677 = vunpack.c.l.b16 %v599
  %v678 = vunpack.c.h.b16 %v599
  %v679 = vunpack.c.l.b16 %v600
  %v680 = vunpack.c.h.b16 %v600
  %v681 = vunpack.c.l.b16 %v601
  %v682 = vunpack.c.h.b16 %v601
  %v683 = vunpack.c.l.b16 %v602
  %v684 = vunpack.c.h.b16 %v602
  %v685 = vunpack.c.l.b16 %v603
  %v686 = vunpack.c.h.b16 %v603
  %v687 = vunpack.c.l.b16 %v604
  %v688 = vunpack.c.h.b16 %v604
  %v689 = vpack.c.b16 %v659, %v657
  %v690 = vpack.c.b16 %v660, %v658
  %v691 = vpack.c.b16 %v663, %v661
  %v692 = vpack.c.b16 %v664, %v662
  %v693 = vpack.c.b16 %v667, %v665
  %v694 = vpack.c.b16 %v668, %v666
  %v695 = vpack.c.b16 %v671, %v669
  %v696 = vpack.c.b16 %v672, %v670
  %v697 = vpack.c.b16 %v675, %v673
  %v698 = vpack.c.b16 %v676, %v674
  %v699 = vpack.c.b16 %v679, %v677
  %v700 = vpack.c.b16 %v680, %v678
  %v701 = vpack.c.b16 %v683, %v681
  %v702 = vpack.c.b16 %v684, %v682
  %v703 = vpack.c.b16 %v687, %v685
  %v704 = vpack.c.b16 %v688, %v686
  %v753 = vunpack.c.l.b16 %v605
  %v754 = vunpack.c.l.b16 %v606
  %v755 = vunpack.c.l.b16 %v607
  %v756 = vunpack.c.l.b16 %v608
  %v757 = vunpack.c.l.b16 %v609
  %v758 = vunpack.c.l.b16 %v610
  %v759 = vunpack.c.l.b16 %v611
  %v760 = vunpack.c.l.b16 %v612
  %v761 = vunpack.c.l.b16 %v613
  %v762 = vunpack.c.l.b16 %v614
  %v763 = vunpack.c.l.b16 %v615
  %v764 = vunpack.c.l.b16 %v616
  %v765 = vunpack.c.l.b16 %v617
  %v766 = vunpack.c.l.b16 %v618
  %v767 = vunpack.c.l.b16 %v619
  %v768 = vunpack.c.l.b16 %v620
  %v769 = vunpack.c.l.b16 %v621
  %v770 = vunpack.c.l.b16 %v622
  %v771 = vunpack.c.l.b16 %v623
  %v772 = vunpack.c.l.b16 %v624
  %v773 = vunpack.c.l.b16 %v625
  %v774 = vunpack.c.l.b16 %v626
  %v775 = vunpack.c.l.b16 %v627
  %v776 = vunpack.c.l.b16 %v628
  %v777 = vunpack.c.l.b16 %v629
  %v778 = vunpack.c.l.b16 %v630
  %v779 = vunpack.c.l.b16 %v631
  %v780 = vunpack.c.l.b16 %v632
  %v781 = vunpack.c.l.b16 %v633
  %v782 = vunpack.c.l.b16 %v634
  %v783 = vunpack.c.l.b16 %v635
  %v784 = vunpack.c.l.b16 %v636
  %v785 = vpack.c.b16 %v754, %v753
  %v786 = vpack.c.b16 %v756, %v755
  %v787 = vpack.c.b16 %v758, %v757
  %v788 = vpack.c.b16 %v760, %v759
  %v789 = vpack.c.b16 %v762, %v761
  %v790 = vpack.c.b16 %v764, %v763
  %v791 = vpack.c.b16 %v766, %v765
  %v792 = vpack.c.b16 %v768, %v767
  %v793 = vpack.c.b16 %v770, %v769
  %v794 = vpack.c.b16 %v772, %v771
  %v795 = vpack.c.b16 %v774, %v773
  %v796 = vpack.c.b16 %v776, %v775
  %v797 = vpack.c.b16 %v778, %v777
  %v798 = vpack.c.b16 %v780, %v779
  %v799 = vpack.c.b16 %v782, %v781
  %v800 = vpack.c.b16 %v784, %v783
  %817 = vmatpush.bf16.msra.mxu0 %v792
  %818 = vmatpush.bf16.msra.mxu0 %v791
  %819 = vmatpush.bf16.msra.mxu0 %v790
  %820 = vmatpush.bf16.msra.mxu0 %v789
  %821 = vmatpush.bf16.msra.mxu0 %v788
  %822 = vmatpush.bf16.msra.mxu0 %v787
  %823 = vmatpush.bf16.msra.mxu0 %v786
  %824 = vmatpush.bf16.msra.mxu0 %v785
  %825 = vmatmul.bf16.gmra.mxu0 %v689
  %v826 = vpop.f32.mrf.mxu0
  %v827 = vadd.f32 %v639, %v826
  %v828 = vpop.f32.mrf.mxu0
  %v829 = vadd.f32 %v639, %v828
  %830 = vmatmul.bf16.gmra.mxu0 %v691
  %v831 = vpop.f32.mrf.mxu0
  %v832 = vadd.f32 %v639, %v831
  %v833 = vpop.f32.mrf.mxu0
  %v834 = vadd.f32 %v639, %v833
  %835 = vmatmul.bf16.gmra.mxu0 %v693
  %v836 = vpop.f32.mrf.mxu0
  %v837 = vadd.f32 %v639, %v836
  %v838 = vpop.f32.mrf.mxu0
  %v839 = vadd.f32 %v639, %v838
  %840 = vmatmul.bf16.gmra.mxu0 %v695
  %v841 = vpop.f32.mrf.mxu0
  %v842 = vadd.f32 %v639, %v841
  %v843 = vpop.f32.mrf.mxu0
  %v844 = vadd.f32 %v639, %v843
  %845 = vmatmul.bf16.gmra.mxu0 %v697
  %v846 = vpop.f32.mrf.mxu0
  %v847 = vadd.f32 %v639, %v846
  %v848 = vpop.f32.mrf.mxu0
  %v849 = vadd.f32 %v639, %v848
  %850 = vmatmul.bf16.gmra.mxu0 %v699
  %v851 = vpop.f32.mrf.mxu0
  %v852 = vadd.f32 %v639, %v851
  %v853 = vpop.f32.mrf.mxu0
  %v854 = vadd.f32 %v639, %v853
  %855 = vmatmul.bf16.gmra.mxu0 %v701
  %v856 = vpop.f32.mrf.mxu0
  %v857 = vadd.f32 %v639, %v856
  %v858 = vpop.f32.mrf.mxu0
  %v859 = vadd.f32 %v639, %v858
  %860 = vmatmul.bf16.gmra.mxu0 %v703
  %v861 = vpop.f32.mrf.mxu0
  %v862 = vadd.f32 %v639, %v861
  %v863 = vpop.f32.mrf.mxu0
  %v864 = vadd.f32 %v639, %v863
  %865 = vdwg.mxu0
  %866 = vmatpush.bf16.msra.mxu0 %v800
  %867 = vmatpush.bf16.msra.mxu0 %v799
  %868 = vmatpush.bf16.msra.mxu0 %v798
  %869 = vmatpush.bf16.msra.mxu0 %v797
  %870 = vmatpush.bf16.msra.mxu0 %v796
  %871 = vmatpush.bf16.msra.mxu0 %v795
  %872 = vmatpush.bf16.msra.mxu0 %v794
  %873 = vmatpush.bf16.msra.mxu0 %v793
  %874 = vmatmul.bf16.gmra.mxu0 %v690
  %v875 = vpop.f32.mrf.mxu0
  %v876 = vadd.f32 %v827, %v875
  %v877 = vpop.f32.mrf.mxu0
  %v878 = vadd.f32 %v829, %v877
  %879 = vmatmul.bf16.gmra.mxu0 %v692
  %v880 = vpop.f32.mrf.mxu0
  %v881 = vadd.f32 %v832, %v880
  %v882 = vpop.f32.mrf.mxu0
  %v883 = vadd.f32 %v834, %v882
  %884 = vmatmul.bf16.gmra.mxu0 %v694
  %v885 = vpop.f32.mrf.mxu0
  %v886 = vadd.f32 %v837, %v885
  %v887 = vpop.f32.mrf.mxu0
  %v888 = vadd.f32 %v839, %v887
  %889 = vmatmul.bf16.gmra.mxu0 %v696
  %v890 = vpop.f32.mrf.mxu0
  %v891 = vadd.f32 %v842, %v890
  %v892 = vpop.f32.mrf.mxu0
  %v893 = vadd.f32 %v844, %v892
  %894 = vmatmul.bf16.gmra.mxu0 %v698
  %v895 = vpop.f32.mrf.mxu0
  %v896 = vadd.f32 %v847, %v895
  %v897 = vpop.f32.mrf.mxu0
  %v898 = vadd.f32 %v849, %v897
  %899 = vmatmul.bf16.gmra.mxu0 %v700
  %v900 = vpop.f32.mrf.mxu0
  %v901 = vadd.f32 %v852, %v900
  %v902 = vpop.f32.mrf.mxu0
  %v903 = vadd.f32 %v854, %v902
  %904 = vmatmul.bf16.gmra.mxu0 %v702
  %v905 = vpop.f32.mrf.mxu0
  %v906 = vadd.f32 %v857, %v905
  %v907 = vpop.f32.mrf.mxu0
  %v908 = vadd.f32 %v859, %v907
  %909 = vmatmul.bf16.gmra.mxu0 %v704
  %v910 = vpop.f32.mrf.mxu0
  %v911 = vadd.f32 %v862, %v910
  %v912 = vpop.f32.mrf.mxu0
  %v913 = vadd.f32 %v864, %v912
  %914 = vdwg.mxu0
  %v915 = vmax.f32 %v876, 0.0
  %v916 = vmax.f32 %v878, 0.0
  %v917 = vmax.f32 %v881, 0.0
  %v918 = vmax.f32 %v883, 0.0
  %v919 = vmax.f32 %v886, 0.0
  %v920 = vmax.f32 %v888, 0.0
  %v921 = vmax.f32 %v891, 0.0
  %v922 = vmax.f32 %v893, 0.0
  %v923 = vmax.f32 %v896, 0.0
  %v924 = vmax.f32 %v898, 0.0
  %v925 = vmax.f32 %v901, 0.0
  %v926 = vmax.f32 %v903, 0.0
  %v927 = vmax.f32 %v906, 0.0
  %v928 = vmax.f32 %v908, 0.0
  %v929 = vmax.f32 %v911, 0.0
  %v930 = vmax.f32 %v913, 0.0
  %v931 = vpack.c.bf16 %v916, %v915
  %v932 = vpack.c.bf16 %v918, %v917
  %v933 = vpack.c.bf16 %v920, %v919
  %v934 = vpack.c.bf16 %v922, %v921
  %v935 = vpack.c.bf16 %v924, %v923
  %v936 = vpack.c.bf16 %v926, %v925
  %v937 = vpack.c.bf16 %v928, %v927
  %v938 = vpack.c.bf16 %v930, %v929
  %v939 = vld [vmem:[%s7] sm:$0xf]
  %v940 = vld [vmem:[%s7 + $0x4] sm:$0xf]
  %v941 = vld [vmem:[%s7 + $0x8] sm:$0xf]
  %v942 = vld [vmem:[%s7 + $0xc] sm:$0xf]
  %v943 = vld [vmem:[%s7 + $0x10] sm:$0xf]
  %v944 = vld [vmem:[%s7 + $0x14] sm:$0xf]
  %v945 = vld [vmem:[%s7 + $0x18] sm:$0xf]
  %v946 = vld [vmem:[%s7 + $0x1c] sm:$0xf]
  %v947 = vld [vmem:[%s7 + $0x20] sm:$0xf]
  %v948 = vld [vmem:[%s7 + $0x24] sm:$0xf]
  %v949 = vld [vmem:[%s7 + $0x28] sm:$0xf]
  %v950 = vld [vmem:[%s7 + $0x2c] sm:$0xf]
  %v951 = vld [vmem:[%s7 + $0x30] sm:$0xf]
  %v952 = vld [vmem:[%s7 + $0x34] sm:$0xf]
  %v953 = vld [vmem:[%s7 + $0x38] sm:$0xf]
  %v954 = vld [vmem:[%s7 + $0x3c] sm:$0xf]
  %v955 = vld [vmem:[%s8] sm:$0x1]
  %v957 = vperm.slane %v955, 0
  %v975 = vunpack.c.l.b16 %v939
  %v976 = vunpack.c.l.b16 %v940
  %v977 = vunpack.c.l.b16 %v941
  %v978 = vunpack.c.l.b16 %v942
  %v979 = vunpack.c.l.b16 %v943
  %v980 = vunpack.c.l.b16 %v944
  %v981 = vunpack.c.l.b16 %v945
  %v982 = vunpack.c.l.b16 %v946
  %v983 = vunpack.c.l.b16 %v947
  %v984 = vunpack.c.l.b16 %v948
  %v985 = vunpack.c.l.b16 %v949
  %v986 = vunpack.c.l.b16 %v950
  %v987 = vunpack.c.l.b16 %v951
  %v988 = vunpack.c.l.b16 %v952
  %v989 = vunpack.c.l.b16 %v953
  %v990 = vunpack.c.l.b16 %v954
  %v991 = vpack.c.b16 %v976, %v975
  %v992 = vpack.c.b16 %v978, %v977
  %v993 = vpack.c.b16 %v980, %v979
  %v994 = vpack.c.b16 %v982, %v981
  %v995 = vpack.c.b16 %v984, %v983
  %v996 = vpack.c.b16 %v986, %v985
  %v997 = vpack.c.b16 %v988, %v987
  %v998 = vpack.c.b16 %v990, %v989
  %1007 = vmatpush.bf16.msra.mxu0 %v998
  %1008 = vmatpush.bf16.msra.mxu0 %v997
  %1009 = vmatpush.bf16.msra.mxu0 %v996
  %1010 = vmatpush.bf16.msra.mxu0 %v995
  %1011 = vmatpush.bf16.msra.mxu0 %v994
  %1012 = vmatpush.bf16.msra.mxu0 %v993
  %1013 = vmatpush.bf16.msra.mxu0 %v992
  %1014 = vmatpush.bf16.msra.mxu0 %v991
  %1015 = vmatmul.bf16.gmra.mxu0 %v931
  %v1016 = vpop.f32.mrf.mxu0
  %v1017 = vadd.f32 %v957, %v1016
  %v1018 = vpop.f32.mrf.mxu0
  %v1019 = vadd.f32 %v957, %v1018
  %1020 = vmatmul.bf16.gmra.mxu0 %v932
  %v1021 = vpop.f32.mrf.mxu0
  %v1022 = vadd.f32 %v957, %v1021
  %v1023 = vpop.f32.mrf.mxu0
  %v1024 = vadd.f32 %v957, %v1023
  %1025 = vmatmul.bf16.gmra.mxu0 %v933
  %v1026 = vpop.f32.mrf.mxu0
  %v1027 = vadd.f32 %v957, %v1026
  %v1028 = vpop.f32.mrf.mxu0
  %v1029 = vadd.f32 %v957, %v1028
  %1030 = vmatmul.bf16.gmra.mxu0 %v934
  %v1031 = vpop.f32.mrf.mxu0
  %v1032 = vadd.f32 %v957, %v1031
  %v1033 = vpop.f32.mrf.mxu0
  %v1034 = vadd.f32 %v957, %v1033
  %1035 = vmatmul.bf16.gmra.mxu0 %v935
  %v1036 = vpop.f32.mrf.mxu0
  %v1037 = vadd.f32 %v957, %v1036
  %v1038 = vpop.f32.mrf.mxu0
  %v1039 = vadd.f32 %v957, %v1038
  %1040 = vmatmul.bf16.gmra.mxu0 %v936
  %v1041 = vpop.f32.mrf.mxu0
  %v1042 = vadd.f32 %v957, %v1041
  %v1043 = vpop.f32.mrf.mxu0
  %v1044 = vadd.f32 %v957, %v1043
  %1045 = vmatmul.bf16.gmra.mxu0 %v937
  %v1046 = vpop.f32.mrf.mxu0
  %v1047 = vadd.f32 %v957, %v1046
  %v1048 = vpop.f32.mrf.mxu0
  %v1049 = vadd.f32 %v957, %v1048
  %1050 = vmatmul.bf16.gmra.mxu0 %v938
  %v1051 = vpop.f32.mrf.mxu0
  %v1052 = vadd.f32 %v957, %v1051
  %v1053 = vpop.f32.mrf.mxu0
  %v1054 = vadd.f32 %v957, %v1053
  %1055 = vdwg.mxu0
  %v1056 = vmax.f32 %v1017, 0.0
  %v1057 = vmax.f32 %v1019, 0.0
  %v1058 = vmax.f32 %v1022, 0.0
  %v1059 = vmax.f32 %v1024, 0.0
  %v1060 = vmax.f32 %v1027, 0.0
  %v1061 = vmax.f32 %v1029, 0.0
  %v1062 = vmax.f32 %v1032, 0.0
  %v1063 = vmax.f32 %v1034, 0.0
  %v1064 = vmax.f32 %v1037, 0.0
  %v1065 = vmax.f32 %v1039, 0.0
  %v1066 = vmax.f32 %v1042, 0.0
  %v1067 = vmax.f32 %v1044, 0.0
  %v1068 = vmax.f32 %v1047, 0.0
  %v1069 = vmax.f32 %v1049, 0.0
  %v1070 = vmax.f32 %v1052, 0.0
  %v1071 = vmax.f32 %v1054, 0.0
  %v1072 = vpack.c.bf16 %v1057, %v1056
  %v1073 = vpack.c.bf16 %v1059, %v1058
  %v1074 = vpack.c.bf16 %v1061, %v1060
  %v1075 = vpack.c.bf16 %v1063, %v1062
  %v1076 = vpack.c.bf16 %v1065, %v1064
  %v1077 = vpack.c.bf16 %v1067, %v1066
  %v1078 = vpack.c.bf16 %v1069, %v1068
  %v1079 = vpack.c.bf16 %v1071, %v1070
  %v1080 = vld [vmem:[%s9] sm:$0xf]
  %v1081 = vld [vmem:[%s9 + $0x4] sm:$0xf]
  %v1082 = vld [vmem:[%s9 + $0x8] sm:$0xf]
  %v1083 = vld [vmem:[%s9 + $0xc] sm:$0xf]
  %v1084 = vld [vmem:[%s9 + $0x10] sm:$0xf]
  %v1085 = vld [vmem:[%s9 + $0x14] sm:$0xf]
  %v1086 = vld [vmem:[%s9 + $0x18] sm:$0xf]
  %v1087 = vld [vmem:[%s9 + $0x1c] sm:$0xf]
  %v1088 = vld [vmem:[%s9 + $0x20] sm:$0xf]
  %v1089 = vld [vmem:[%s9 + $0x24] sm:$0xf]
  %v1090 = vld [vmem:[%s9 + $0x28] sm:$0xf]
  %v1091 = vld [vmem:[%s9 + $0x2c] sm:$0xf]
  %v1092 = vld [vmem:[%s9 + $0x30] sm:$0xf]
  %v1093 = vld [vmem:[%s9 + $0x34] sm:$0xf]
  %v1094 = vld [vmem:[%s9 + $0x38] sm:$0xf]
  %v1095 = vld [vmem:[%s9 + $0x3c] sm:$0xf]
  %v1096 = vld [vmem:[%s10] sm:$0x1]
  %v1098 = vperm.slane %v1096, 0
  %v1116 = vunpack.c.l.b16 %v1080
  %v1117 = vunpack.c.l.b16 %v1081
  %v1118 = vunpack.c.l.b16 %v1082
  %v1119 = vunpack.c.l.b16 %v1083
  %v1120 = vunpack.c.l.b16 %v1084
  %v1121 = vunpack.c.l.b16 %v1085
  %v1122 = vunpack.c.l.b16 %v1086
  %v1123 = vunpack.c.l.b16 %v1087
  %v1124 = vunpack.c.l.b16 %v1088
  %v1125 = vunpack.c.l.b16 %v1089
  %v1126 = vunpack.c.l.b16 %v1090
  %v1127 = vunpack.c.l.b16 %v1091
  %v1128 = vunpack.c.l.b16 %v1092
  %v1129 = vunpack.c.l.b16 %v1093
  %v1130 = vunpack.c.l.b16 %v1094
  %v1131 = vunpack.c.l.b16 %v1095
  %v1132 = vpack.c.b16 %v1117, %v1116
  %v1133 = vpack.c.b16 %v1119, %v1118
  %v1134 = vpack.c.b16 %v1121, %v1120
  %v1135 = vpack.c.b16 %v1123, %v1122
  %v1136 = vpack.c.b16 %v1125, %v1124
  %v1137 = vpack.c.b16 %v1127, %v1126
  %v1138 = vpack.c.b16 %v1129, %v1128
  %v1139 = vpack.c.b16 %v1131, %v1130
  %1148 = vmatpush.bf16.msra.mxu0 %v1139
  %1149 = vmatpush.bf16.msra.mxu0 %v1138
  %1150 = vmatpush.bf16.msra.mxu0 %v1137
  %1151 = vmatpush.bf16.msra.mxu0 %v1136
  %1152 = vmatpush.bf16.msra.mxu0 %v1135
  %1153 = vmatpush.bf16.msra.mxu0 %v1134
  %1154 = vmatpush.bf16.msra.mxu0 %v1133
  %1155 = vmatpush.bf16.msra.mxu0 %v1132
  %1156 = vmatmul.bf16.gmra.mxu0 %v1072
  %v1157 = vpop.f32.mrf.mxu0
  %v1158 = vadd.f32 %v1098, %v1157
  %v1159 = vpop.f32.mrf.mxu0
  %v1160 = vadd.f32 %v1098, %v1159
  %1161 = vmatmul.bf16.gmra.mxu0 %v1073
  %v1162 = vpop.f32.mrf.mxu0
  %v1163 = vadd.f32 %v1098, %v1162
  %v1164 = vpop.f32.mrf.mxu0
  %v1165 = vadd.f32 %v1098, %v1164
  %1166 = vmatmul.bf16.gmra.mxu0 %v1074
  %v1167 = vpop.f32.mrf.mxu0
  %v1168 = vadd.f32 %v1098, %v1167
  %v1169 = vpop.f32.mrf.mxu0
  %v1170 = vadd.f32 %v1098, %v1169
  %1171 = vmatmul.bf16.gmra.mxu0 %v1075
  %v1172 = vpop.f32.mrf.mxu0
  %v1173 = vadd.f32 %v1098, %v1172
  %v1174 = vpop.f32.mrf.mxu0
  %v1175 = vadd.f32 %v1098, %v1174
  %1176 = vmatmul.bf16.gmra.mxu0 %v1076
  %v1177 = vpop.f32.mrf.mxu0
  %v1178 = vadd.f32 %v1098, %v1177
  %v1179 = vpop.f32.mrf.mxu0
  %v1180 = vadd.f32 %v1098, %v1179
  %1181 = vmatmul.bf16.gmra.mxu0 %v1077
  %v1182 = vpop.f32.mrf.mxu0
  %v1183 = vadd.f32 %v1098, %v1182
  %v1184 = vpop.f32.mrf.mxu0
  %v1185 = vadd.f32 %v1098, %v1184
  %1186 = vmatmul.bf16.gmra.mxu0 %v1078
  %v1187 = vpop.f32.mrf.mxu0
  %v1188 = vadd.f32 %v1098, %v1187
  %v1189 = vpop.f32.mrf.mxu0
  %v1190 = vadd.f32 %v1098, %v1189
  %1191 = vmatmul.bf16.gmra.mxu0 %v1079
  %v1192 = vpop.f32.mrf.mxu0
  %v1193 = vadd.f32 %v1098, %v1192
  %v1194 = vpop.f32.mrf.mxu0
  %v1195 = vadd.f32 %v1098, %v1194
  %1196 = vdwg.mxu0
  %1197 = vst [vmem:[%s11] sm:$0xff] %v1158
  %1198 = vst [vmem:[%s11 + $0x8] sm:$0xff] %v1160
  %1199 = vst [vmem:[%s11 + $0x10] sm:$0xff] %v1163
  %1200 = vst [vmem:[%s11 + $0x18] sm:$0xff] %v1165
  %1201 = vst [vmem:[%s11 + $0x20] sm:$0xff] %v1168
  %1202 = vst [vmem:[%s11 + $0x28] sm:$0xff] %v1170
  %1203 = vst [vmem:[%s11 + $0x30] sm:$0xff] %v1173
  %1204 = vst [vmem:[%s11 + $0x38] sm:$0xff] %v1175
  %1205 = vst [vmem:[%s11 + $0x40] sm:$0xff] %v1178
  %1206 = vst [vmem:[%s11 + $0x48] sm:$0xff] %v1180
  %1207 = vst [vmem:[%s11 + $0x50] sm:$0xff] %v1183
  %1208 = vst [vmem:[%s11 + $0x58] sm:$0xff] %v1185
  %1209 = vst [vmem:[%s11 + $0x60] sm:$0xff] %v1188
  %1210 = vst [vmem:[%s11 + $0x68] sm:$0xff] %v1190
  %1211 = vst [vmem:[%s11 + $0x70] sm:$0xff] %v1193
  %1212 = vst [vmem:[%s11 + $0x78] sm:$0xff] %v1195
  // Predicated region
  $region46: #{financial_forecasting_forward.1} parent=0 // pred_check
    _
  $region47: #{financial_forecasting_forward.1} parent=0 // pred_check_branch
    %1214 = sbr.rel (0) target = $region49
  $region48: #{financial_forecasting_forward.1} parent=0 // pred_region
    _
  $region49: #{financial_forecasting_forward.1} parent=0 // pred_fallthru
    _
  // Predicated region
  $region50: #{financial_forecasting_forward.1} parent=0 // pred_check
    _
  $region51: #{financial_forecasting_forward.1} parent=0 // pred_check_branch
    %1216 = sbr.rel (0) target = $region53
  $region52: #{financial_forecasting_forward.1} parent=0 // pred_region
    _
  $region53: #{financial_forecasting_forward.1} parent=0 // pred_fallthru
    _

</llo_original>
